<compile_context>
chip_gen: v7x
topology: tpu7x:2x2x1
jax: 0.10.0
libtpu: 0.0.40
codegen_flags: <defaults>
</compile_context>

<pallas_src>
import functools

import jax
import jax.numpy as jnp
from jax import lax
from jax.experimental import pallas as pl
from jax.experimental.pallas import tpu as pltpu


def _round_up(x, m):
    return (x + m - 1) // m * m


def _conv_bn_relu_kernel(a_ref, b_ref, w_ref, bias_ref, o_ref, *, mode):
    """One (batch, cout-tile, row-tile) block per grid step.

    a_ref:    (TH, Wp, Cin)   bf16 row tile of the padded input
    b_ref:    (2, Wp, Cin)    bf16 2-row bottom halo (same padded array)
    w_ref:    (1, 9*Cin, TC)  bf16 BN-scale-folded weights  (mode == "khw")
              (3, 3*Cin, TC)                                 (mode == "kw")
              (9, Cin,   TC)                                 (mode == "none")
    bias_ref: (1, TC)         f32 folded BN bias (incl. conv bias)
    o_ref:    (TH, W, TC)     bf16 output tile
    """
    TH, W, TC = o_ref.shape
    Cin = a_ref.shape[-1]
    f32 = jnp.float32

    # Assemble the (TH+2)-row halo tile (amortized by the large row tile).
    x = jnp.concatenate([a_ref[...], b_ref[...]], axis=0)        # (TH+2, Wp, Cin)
    # kw (sublane-axis) shifts hoisted out of the tap loops: 3 relayouts/tile.
    shifts = [x[:, kw:kw + W, :] for kw in range(3)]             # (TH+2, W, Cin)

    if mode == "khw":
        # Small Cin: fuse all 9 taps into one K = 9*Cin contraction.
        xs = jnp.concatenate(shifts, axis=-1)                    # (TH+2, W, 3Cin)
        patch = jnp.concatenate([xs[kh:kh + TH] for kh in range(3)], axis=-1)
        acc = jnp.dot(patch.reshape(TH * W, 9 * Cin), w_ref[0],
                      preferred_element_type=f32)
    elif mode == "kw":
        # Mid Cin: fuse the 3 kw taps (K = 3*Cin), 3 dots, value accumulation.
        xs = jnp.concatenate(shifts, axis=-1)                    # (TH+2, W, 3Cin)
        acc = jnp.dot(xs[0:TH].reshape(TH * W, 3 * Cin), w_ref[0],
                      preferred_element_type=f32)
        for kh in range(1, 3):
            acc = acc + jnp.dot(xs[kh:kh + TH].reshape(TH * W, 3 * Cin),
                                w_ref[kh], preferred_element_type=f32)
    else:
        # Large Cin: per-tap dots already fill the MXU contraction depth.
        acc = None
        for kh in range(3):
            for kw in range(3):
                d = jnp.dot(shifts[kw][kh:kh + TH].reshape(TH * W, Cin),
                            w_ref[kh * 3 + kw], preferred_element_type=f32)
                acc = d if acc is None else acc + d

    # Folded-BN bias + ReLU epilogue in f32; single lane-dense bf16 store.
    y = jnp.maximum(acc + bias_ref[...], 0.0)
    o_ref[...] = y.reshape(TH, W, TC).astype(o_ref.dtype)


def conv_bn_relu(x_nchw, w_oihw, conv_b, gamma, beta, run_mean, run_var,
                 eps=1e-5, *, row_tile=16, cout_tile=128):
    """y = ReLU(BN(Conv2d(x, k=3, stride=1, pad=1))).  NCHW in, NCHW bf16 out.

    row_tile / cout_tile are the per-generation knobs: TH=16/TC=128 works
    everywhere; on v6e raise row_tile (and cout_tile to 256 for Cout>=256) and
    bump vmem_limit_bytes if the per-step footprint grows past ~16 MiB.
    """
    N, Cin, H, W = x_nchw.shape
    Cout = w_oihw.shape[0]

    # --- static tile / fusion choices ---------------------------------------
    TH = max(2, min(int(row_tile), _round_up(H, 2)))   # clamp to image height
    TH += TH % 2                                        # even (2-row halo tiling)
    TC = 128 * max(1, int(cout_tile) // 128)            # lane-dense Cout tile
    H_pad = _round_up(H, TH)
    W_pad = _round_up(W, 16)                            # packed bf16 output rows
    C_pad = _round_up(Cout, TC)
    if 9 * Cin <= 576:
        mode = "khw"        # one K = 9*Cin dot per tile
    elif 3 * Cin <= 384:
        mode = "kw"         # three K = 3*Cin dots
    else:
        mode = "none"       # nine K = Cin dots (Cin already MXU-deep)

    # --- layout conversion, padding, BN folding (plain JAX glue) ------------
    x_nhwc = jnp.transpose(x_nchw, (0, 2, 3, 1)).astype(jnp.bfloat16)
    x_pad = jnp.pad(
        x_nhwc,
        ((0, 0),
         (1, (H_pad - H) + TH - 1),   # 1 conv-halo row on top; round-up + halo below
         (1, (W_pad - W) + 1),
         (0, 0)))                     # -> (N, H_pad + TH, W_pad + 2, Cin)

    inv_std = 1.0 / jnp.sqrt(run_var + eps)
    scale = (gamma * inv_std).astype(jnp.float32)
    bias = (beta + (conv_b - run_mean) * gamma * inv_std).astype(jnp.float32)
    bias = jnp.pad(bias, (0, C_pad - Cout)).reshape(1, C_pad)

    # Fold the BN scale into the conv weights (free at trace time).
    w_khwc = jnp.transpose(w_oihw, (2, 3, 1, 0)) * scale[None, None, None, :]
    w_khwc = jnp.pad(w_khwc, ((0, 0), (0, 0), (0, 0), (0, C_pad - Cout)))
    if mode == "khw":
        w_k = w_khwc.reshape(1, 9 * Cin, C_pad)
    elif mode == "kw":
        w_k = w_khwc.reshape(3, 3 * Cin, C_pad)
    else:
        w_k = w_khwc.reshape(9, Cin, C_pad)
    w_k = w_k.astype(jnp.bfloat16)

    nH = H_pad // TH
    nC = C_pad // TC
    Wp = W_pad + 2
    half_th = TH // 2

    kernel = functools.partial(_conv_bn_relu_kernel, mode=mode)

    cost = pl.CostEstimate(
        flops=2 * N * H_pad * W_pad * 9 * Cin * C_pad,
        transcendentals=0,
        bytes_accessed=int(nC * x_pad.size * 2 + N * w_k.size * 2
                           + bias.size * 4 + N * H_pad * W_pad * C_pad * 2))

    out = pl.pallas_call(
        kernel,
        out_shape=jax.ShapeDtypeStruct((N, H_pad, W_pad, C_pad), jnp.bfloat16),
        grid=(N, nC, nH),
        in_specs=[
            # TH-row input tile.
            pl.BlockSpec((pl.Squeezed(), TH, Wp, Cin),
                         lambda n, c, h: (n, h, 0, 0)),
            # 2-row bottom halo (same padded array, tiled in 2-row blocks).
            pl.BlockSpec((pl.Squeezed(), 2, Wp, Cin),
                         lambda n, c, h: (n, (h + 1) * half_th, 0, 0)),
            # Weights: one Cout tile, reused across all row tiles.
            pl.BlockSpec((w_k.shape[0], w_k.shape[1], TC),
                         lambda n, c, h: (0, 0, c)),
            # Folded bias (scale already folded into the weights).
            pl.BlockSpec((1, TC), lambda n, c, h: (0, c)),
        ],
        out_specs=pl.BlockSpec((pl.Squeezed(), TH, W_pad, TC),
                               lambda n, c, h: (n, h, 0, c)),
        compiler_params=pltpu.CompilerParams(
            dimension_semantics=("parallel", "parallel", "parallel"),
            vmem_limit_bytes=32 * 1024 * 1024),
        cost_estimate=cost,
    )(x_pad, x_pad, w_k, bias)

    out = out[:, :H, :W, :Cout]                    # strip alignment padding
    return jnp.transpose(out, (0, 3, 1, 2))        # NCHW, bf16


def _reference(x, w, b, gamma, beta, rmean, rvar, eps=1e-5):
    # Mimics the kernel's quantization policy (bf16 activations, BN scale
    # folded into bf16 weights, f32 accumulation, bf16 output store) for a
    # tight numerical comparison.
    inv_std = 1.0 / jnp.sqrt(rvar + eps)
    scale = gamma * inv_std
    bias = beta + (b - rmean) * scale
    xq = x.astype(jnp.bfloat16).astype(jnp.float32)
    wq = (w * scale[:, None, None, None]).astype(jnp.bfloat16).astype(jnp.float32)
    y = lax.conv_general_dilated(
        xq, wq, window_strides=(1, 1), padding=((1, 1), (1, 1)),
        dimension_numbers=("NCHW", "OIHW", "NCHW"))
    y = jnp.maximum(y + bias.reshape(1, -1, 1, 1), 0.0)
    return y.astype(jnp.bfloat16).astype(jnp.float32)


if __name__ == "__main__":
    key = jax.random.PRNGKey(0)
    k_x, k_w, k_b, k_g, k_be, k_m, k_v = jax.random.split(key, 7)

    N, Cin, Cout, H, W = 2, 4, 8, 16, 16
    x = jax.random.normal(k_x, (N, Cin, H, W), jnp.float32)
    w = jax.random.normal(k_w, (Cout, Cin, 3, 3), jnp.float32) * 0.1
    conv_b = jax.random.normal(k_b, (Cout,), jnp.float32) * 0.1
    gamma = 1.0 + 0.1 * jax.random.normal(k_g, (Cout,), jnp.float32)
    beta = 0.1 * jax.random.normal(k_be, (Cout,), jnp.float32)
    run_mean = 0.1 * jax.random.normal(k_m, (Cout,), jnp.float32)
    run_var = jnp.abs(jax.random.normal(k_v, (Cout,), jnp.float32)) + 0.5

    out = conv_bn_relu(x, w, conv_b, gamma, beta, run_mean, run_var)
    out = jax.block_until_ready(out)

    ref = _reference(x, w, conv_b, gamma, beta, run_mean, run_var)
    assert out.shape == (N, Cout, H, W)
    assert out.dtype == jnp.bfloat16
    out_f32 = out.astype(jnp.float32)
    max_err = float(jnp.max(jnp.abs(out_f32 - ref)))
    assert jnp.allclose(out_f32, ref, atol=2e-2, rtol=2e-2), (
        f"mismatch vs reference (max abs err {max_err})")

    print("KERNEL_OK")
</pallas_src>

<mosaic_0001>
module attributes {stable_mosaic.version = 11 : i64} {
  func.func @_conv_bn_relu_kernel(%arg0: i32, %arg1: i32, %arg2: i32, %arg3: memref<1x16x18x4xbf16, #tpu.memory_space<vmem>>, %arg4: memref<1x2x18x4xbf16, #tpu.memory_space<vmem>>, %arg5: memref<1x36x128xbf16, #tpu.memory_space<vmem>>, %arg6: memref<1x128xf32, #tpu.memory_space<vmem>>, %arg7: memref<1x16x16x128xbf16, #tpu.memory_space<vmem>>) attributes {dimension_semantics = [#tpu.dimension_semantics<parallel>, #tpu.dimension_semantics<parallel>, #tpu.dimension_semantics<parallel>], iteration_bounds = array<i64: 2, 1, 1>, scalar_prefetch = 0 : i64, scratch_operands = 0 : i64, tpu.core_type = #tpu.core_type<tc>, window_params = [{transform_indices = @transform_0, window_bounds = array<i64: 1, 16, 18, 4>}, {transform_indices = @transform_1, window_bounds = array<i64: 1, 2, 18, 4>}, {transform_indices = @transform_2, window_bounds = array<i64: 1, 36, 128>}, {transform_indices = @transform_3, window_bounds = array<i64: 1, 128>}, {transform_indices = @transform_4, window_bounds = array<i64: 1, 16, 16, 128>}]} {
    %c0 = arith.constant 0 : index
    %c0_0 = arith.constant 0 : index
    %c0_1 = arith.constant 0 : index
    %c0_2 = arith.constant 0 : index
    %0 = vector.load %arg3[%c0, %c0_0, %c0_1, %c0_2] : memref<1x16x18x4xbf16, #tpu.memory_space<vmem>>, vector<1x16x18x4xbf16>
    %1 = vector.shape_cast %0 : vector<1x16x18x4xbf16> to vector<16x18x4xbf16>
    %c0_3 = arith.constant 0 : index
    %c0_4 = arith.constant 0 : index
    %c0_5 = arith.constant 0 : index
    %c0_6 = arith.constant 0 : index
    %2 = vector.load %arg4[%c0_3, %c0_4, %c0_5, %c0_6] : memref<1x2x18x4xbf16, #tpu.memory_space<vmem>>, vector<1x2x18x4xbf16>
    %3 = vector.shape_cast %2 : vector<1x2x18x4xbf16> to vector<2x18x4xbf16>
    %4 = tpu.concatenate %1, %3 in 0 : vector<16x18x4xbf16>, vector<2x18x4xbf16> -> vector<18x18x4xbf16>
    %5 = vector.extract_strided_slice %4 {offsets = [0, 0, 0], sizes = [18, 16, 4], strides = [1, 1, 1]} : vector<18x18x4xbf16> to vector<18x16x4xbf16>
    %6 = vector.extract_strided_slice %4 {offsets = [0, 1, 0], sizes = [18, 16, 4], strides = [1, 1, 1]} : vector<18x18x4xbf16> to vector<18x16x4xbf16>
    %7 = vector.extract_strided_slice %4 {offsets = [0, 2, 0], sizes = [18, 16, 4], strides = [1, 1, 1]} : vector<18x18x4xbf16> to vector<18x16x4xbf16>
    %8 = tpu.concatenate %5, %6, %7 in 2 : vector<18x16x4xbf16>, vector<18x16x4xbf16>, vector<18x16x4xbf16> -> vector<18x16x12xbf16>
    %9 = vector.extract_strided_slice %8 {offsets = [0, 0, 0], sizes = [16, 16, 12], strides = [1, 1, 1]} : vector<18x16x12xbf16> to vector<16x16x12xbf16>
    %10 = vector.extract_strided_slice %8 {offsets = [1, 0, 0], sizes = [16, 16, 12], strides = [1, 1, 1]} : vector<18x16x12xbf16> to vector<16x16x12xbf16>
    %11 = vector.extract_strided_slice %8 {offsets = [2, 0, 0], sizes = [16, 16, 12], strides = [1, 1, 1]} : vector<18x16x12xbf16> to vector<16x16x12xbf16>
    %12 = tpu.concatenate %9, %10, %11 in 2 : vector<16x16x12xbf16>, vector<16x16x12xbf16>, vector<16x16x12xbf16> -> vector<16x16x36xbf16>
    %13 = vector.shape_cast %12 : vector<16x16x36xbf16> to vector<256x36xbf16>
    %c0_7 = arith.constant 0 : index
    %c0_8 = arith.constant 0 : index
    %c0_9 = arith.constant 0 : index
    %14 = vector.load %arg5[%c0_7, %c0_8, %c0_9] : memref<1x36x128xbf16, #tpu.memory_space<vmem>>, vector<1x36x128xbf16>
    %15 = vector.shape_cast %14 : vector<1x36x128xbf16> to vector<36x128xbf16>
    %cst = arith.constant dense<0.000000e+00> : vector<256x128xf32>
    %16 = tpu.matmul %13, %15, %cst {dimension_numbers = #tpu.dot_dimension_numbers<[1], [0], [0], [1], [0, 0, 1, 1], [], []>} : vector<256x36xbf16>, vector<36x128xbf16>, vector<256x128xf32> -> vector<256x128xf32>
    %c0_10 = arith.constant 0 : index
    %c0_11 = arith.constant 0 : index
    %17 = vector.load %arg6[%c0_10, %c0_11] : memref<1x128xf32, #tpu.memory_space<vmem>>, vector<1x128xf32>
    %18 = vector.broadcast %17 : vector<1x128xf32> to vector<256x128xf32>
    %19 = arith.addf %16, %18 : vector<256x128xf32>
    %cst_12 = arith.constant 0.000000e+00 : f32
    %20 = vector.broadcast %cst_12 : f32 to vector<256x128xf32>
    %21 = arith.maximumf %19, %20 : vector<256x128xf32>
    %22 = vector.shape_cast %21 : vector<256x128xf32> to vector<16x16x128xf32>
    %23 = arith.truncf %22 : vector<16x16x128xf32> to vector<16x16x128xbf16>
    %c0_13 = arith.constant 0 : index
    %c0_14 = arith.constant 0 : index
    %c0_15 = arith.constant 0 : index
    %c0_16 = arith.constant 0 : index
    %24 = vector.load %arg7[%c0_13, %c0_14, %c0_15, %c0_16] : memref<1x16x16x128xbf16, #tpu.memory_space<vmem>>, vector<1x16x16x128xbf16>
    %25 = vector.shape_cast %24 : vector<1x16x16x128xbf16> to vector<16x16x128xbf16>
    %26 = vector.shape_cast %23 : vector<16x16x128xbf16> to vector<1x16x16x128xbf16>
    tpu.vector_store %arg7[%c0_13, %c0_14, %c0_15, %c0_16], %26 {strides = array<i32>} : memref<1x16x16x128xbf16, #tpu.memory_space<vmem>>, vector<1x16x16x128xbf16>,
    return
  }
  func.func @transform_0(%arg0: i32, %arg1: i32, %arg2: i32) -> (i32, i32, i32, i32) {
    %c0_i32 = arith.constant 0 : i32
    %c0_i32_0 = arith.constant 0 : i32
    %c0_i32_1 = arith.constant 0 : i32
    return %arg0, %arg2, %c0_i32, %c0_i32_0 : i32, i32, i32, i32
  }
  func.func @transform_1(%arg0: i32, %arg1: i32, %arg2: i32) -> (i32, i32, i32, i32) {
    %c1_i32 = arith.constant 1 : i32
    %0 = arith.addi %arg2, %c1_i32 : i32
    %c8_i32 = arith.constant 8 : i32
    %1 = arith.muli %0, %c8_i32 : i32
    %c0_i32 = arith.constant 0 : i32
    %c0_i32_0 = arith.constant 0 : i32
    %c0_i32_1 = arith.constant 0 : i32
    return %arg0, %1, %c0_i32, %c0_i32_0 : i32, i32, i32, i32
  }
  func.func @transform_2(%arg0: i32, %arg1: i32, %arg2: i32) -> (i32, i32, i32) {
    %c0_i32 = arith.constant 0 : i32
    %c0_i32_0 = arith.constant 0 : i32
    %c0_i32_1 = arith.constant 0 : i32
    return %c0_i32, %c0_i32_0, %arg1 : i32, i32, i32
  }
  func.func @transform_3(%arg0: i32, %arg1: i32, %arg2: i32) -> (i32, i32) {
    %c0_i32 = arith.constant 0 : i32
    %c0_i32_0 = arith.constant 0 : i32
    return %c0_i32, %arg1 : i32, i32
  }
  func.func @transform_4(%arg0: i32, %arg1: i32, %arg2: i32) -> (i32, i32, i32, i32) {
    %c0_i32 = arith.constant 0 : i32
    %c0_i32_0 = arith.constant 0 : i32
    return %arg0, %arg2, %c0_i32, %arg1 : i32, i32, i32, i32
  }
}

</mosaic_0001>

<llo_original>
// kernel: tpu_custom_call.1
$region0: #{tpu_custom_call.1}
  #allocation0 [shape = 'u32[]', space=smem, size = 0x4, offset = 0x4, fixed_abs, tag = 'smem constant byte address 0x4 - core index']
  #allocation1 [shape = 'u32[144,128]{1,0:T(1,128)}', space=vmem, size = 0x12000, scoped, tag = 'internal scratch']
  %s0 = inlined_call_operand.vmem [shape: bf16[2,32,18,4], index: 0, kind: input, shape index: {}]
  %s1 = inlined_call_operand.vmem [shape: bf16[2,32,18,4], index: 1, kind: input, shape index: {}]
  %s2 = inlined_call_operand.vmem [shape: bf16[1,36,128], index: 2, kind: input, shape index: {}]
  %s3 = inlined_call_operand.vmem [shape: f32[1,128], index: 3, kind: input, shape index: {}]
  %s4 = inlined_call_operand.hbm [shape: bf16[2,16,16,128], index: 4, kind: output, shape index: {}]
  %s5 = sld [smem:[#allocation0]]
  $region49: #{tpu_custom_call.1} parent=0
    _
  %s7 = ssub.s32 1, %s5
  %s8 = scalar_select 0, %s7, %s5
  $region1: #{tpu_custom_call.1} parent=0
    #allocation2 [shape = 'u8[131072]{0}', space=vmem, size = 0x20000, scoped, tag = 'output window, operand 0']
    #allocation3 [shape = 's32[2]{0}', space=sflag, size = 0x8, scoped, tag = 'scoped memory for tpu_custom_call.1']
    %9 = vsyncpa [#allocation3], 0
    %s10 = scalar_lea.sflag [#allocation3], 1
    %11 = vsyncpa %s10, 0
    loop: start=0, step=1, limit=4
    $region2: #{tpu_custom_call.1} parent=1 // loop_pre_header
      _
    $region3: #{tpu_custom_call.1} parent=1 // loop_header
      %s13 = sphi 0, %s17
      %p14 = scmp.ge.s32.totalorder %s13, 4
      %s20 = sphi 0, %s39
      %s21 = sphi 0, %s35
      %s22 = sphi 0, %s31
      %s23 = sphi 0, %s20
      %s24 = sphi 0, %s21
      %s25 = sphi 0, %s22
      %s26 = sphi 0, %s23
      %s27 = sphi 0, %s24
      %s28 = sphi 0, %s25
      %s44 = sphi 0, %s46
      %s47 = sphi 0, %s44
      %s48 = sphi 0, %s47
      %s64 = sphi 0, %s48
      %s76 = sphi 0, %s78
      %s79 = sphi 0, %s76
      %s80 = sphi 0, %s79
      %s96 = sphi 0, %s80
      %s102 = sphi 0, %s104
      %s105 = sphi 0, %s102
      %s106 = sphi 0, %s105
      %s122 = sphi 0, %s106
      %s128 = sphi 0, %s130
      %s131 = sphi 0, %s128
      %s132 = sphi 0, %s131
      %s148 = sphi 0, %s132
      %s158 = sphi 0, %s160
      %s161 = sphi 0, %s158
      %s162 = sphi 0, %s161
      %s178 = sphi 0, %s162
    $region4: #{tpu_custom_call.1} parent=1 // loop_header_branch
      %16 = sbr.rel (%p14) target = $region8
    $region5: #{tpu_custom_call.1} parent=1 // loop_body
      %s18 = ssub.s32 %s13, 1
      %s19 = ssub.s32 %s13, 2
      %s29 = sadd.s32 1, %s22
      %p30 = scmp.ge.s32.totalorder %s29, 1
      %s31 = scalar_select %p30, 0, %s29
      %s32 = sadd.s32 1, %s21
      %s33 = scalar_select %p30, %s32, %s21
      %p34 = scmp.ge.s32.totalorder %s33, 1
      %s35 = scalar_select %p34, 0, %s33
      %s36 = sadd.s32 1, %s20
      %s37 = scalar_select %p34, %s36, %s20
      %p38 = scmp.ge.s32.totalorder %s37, 2
      %s39 = scalar_select %p38, 0, %s37
      %s40 = ssub.s32 %s20, %s39
      %s41 = ssub.s32 %s22, %s31
      %s42 = sor.u32 %s40, %s41
      %p43 = scmp.eq.s32.totalorder %s42, 0
      %s45 = sadd.s32 %s44, 1
      %s46 = scalar_select %p43, %s44, %s45
      %p49 = pneg %p43
      %p50 = scmp.eq.s32.totalorder %s13, 1
      %p51 = por %p49, %p50
      %p52 = scmp.ne.s32.totalorder %s44, %s47
      %p53 = scmp.eq.s32.totalorder %s13, 0
      %p54 = por %p52, %p53
      %p55 = scmp.ne.s32.totalorder %s44, %s47
      %p56 = scmp.eq.s32.totalorder %s18, 1
      %p57 = por %p55, %p56
      %p58 = scmp.ne.s32.totalorder %s47, %s48
      %p59 = scmp.eq.s32.totalorder %s18, 0
      %p60 = por %p58, %p59
      %p61 = scmp.ne.s32.totalorder %s47, %s48
      %p62 = scmp.eq.s32.totalorder %s19, 1
      %p63 = por %p61, %p62
      %p65 = scmp.ne.s32.totalorder %s48, %s64
      %p66 = scmp.eq.s32.totalorder %s19, 0
      %p67 = por %p65, %p66
      %s68 = sadd.s32 %s22, 1
      %s69 = smul.u32 %s68, 8
      %s70 = sadd.s32 %s31, 1
      %s71 = smul.u32 %s70, 8
      %s72 = ssub.s32 %s20, %s39
      %s73 = ssub.s32 %s69, %s71
      %s74 = sor.u32 %s72, %s73
      %p75 = scmp.eq.s32.totalorder %s74, 0
      %s77 = sadd.s32 %s76, 1
      %s78 = scalar_select %p75, %s76, %s77
      %p81 = pneg %p75
      %p82 = scmp.eq.s32.totalorder %s13, 1
      %p83 = por %p81, %p82
      %p84 = scmp.ne.s32.totalorder %s76, %s79
      %p85 = scmp.eq.s32.totalorder %s13, 0
      %p86 = por %p84, %p85
      %p87 = scmp.ne.s32.totalorder %s76, %s79
      %p88 = scmp.eq.s32.totalorder %s18, 1
      %p89 = por %p87, %p88
      %p90 = scmp.ne.s32.totalorder %s79, %s80
      %p91 = scmp.eq.s32.totalorder %s18, 0
      %p92 = por %p90, %p91
      %p93 = scmp.ne.s32.totalorder %s79, %s80
      %p94 = scmp.eq.s32.totalorder %s19, 1
      %p95 = por %p93, %p94
      %p97 = scmp.ne.s32.totalorder %s80, %s96
      %p98 = scmp.eq.s32.totalorder %s19, 0
      %p99 = por %p97, %p98
      %s100 = ssub.s32 %s21, %s35
      %p101 = scmp.eq.s32.totalorder %s100, 0
      %s103 = sadd.s32 %s102, 1
      %s104 = scalar_select %p101, %s102, %s103
      %p107 = pneg %p101
      %p108 = scmp.eq.s32.totalorder %s13, 1
      %p109 = por %p107, %p108
      %p110 = scmp.ne.s32.totalorder %s102, %s105
      %p111 = scmp.eq.s32.totalorder %s13, 0
      %p112 = por %p110, %p111
      %p113 = scmp.ne.s32.totalorder %s102, %s105
      %p114 = scmp.eq.s32.totalorder %s18, 1
      %p115 = por %p113, %p114
      %p116 = scmp.ne.s32.totalorder %s105, %s106
      %p117 = scmp.eq.s32.totalorder %s18, 0
      %p118 = por %p116, %p117
      %p119 = scmp.ne.s32.totalorder %s105, %s106
      %p120 = scmp.eq.s32.totalorder %s19, 1
      %p121 = por %p119, %p120
      %p123 = scmp.ne.s32.totalorder %s106, %s122
      %p124 = scmp.eq.s32.totalorder %s19, 0
      %p125 = por %p123, %p124
      %s126 = ssub.s32 %s21, %s35
      %p127 = scmp.eq.s32.totalorder %s126, 0
      %s129 = sadd.s32 %s128, 1
      %s130 = scalar_select %p127, %s128, %s129
      %p133 = pneg %p127
      %p134 = scmp.eq.s32.totalorder %s13, 1
      %p135 = por %p133, %p134
      %p136 = scmp.ne.s32.totalorder %s128, %s131
      %p137 = scmp.eq.s32.totalorder %s13, 0
      %p138 = por %p136, %p137
      %p139 = scmp.ne.s32.totalorder %s128, %s131
      %p140 = scmp.eq.s32.totalorder %s18, 1
      %p141 = por %p139, %p140
      %p142 = scmp.ne.s32.totalorder %s131, %s132
      %p143 = scmp.eq.s32.totalorder %s18, 0
      %p144 = por %p142, %p143
      %p145 = scmp.ne.s32.totalorder %s131, %s132
      %p146 = scmp.eq.s32.totalorder %s19, 1
      %p147 = por %p145, %p146
      %p149 = scmp.ne.s32.totalorder %s132, %s148
      %p150 = scmp.eq.s32.totalorder %s19, 0
      %p151 = por %p149, %p150
      %s152 = ssub.s32 %s20, %s39
      %s153 = ssub.s32 %s22, %s31
      %s154 = sor.u32 %s152, %s153
      %s155 = ssub.s32 %s21, %s35
      %s156 = sor.u32 %s154, %s155
      %p157 = scmp.eq.s32.totalorder %s156, 0
      %s159 = sadd.s32 %s158, 1
      %s160 = scalar_select %p157, %s158, %s159
      %p163 = pneg %p157
      %p164 = scmp.eq.s32.totalorder %s13, 1
      %p165 = por %p163, %p164
      %p166 = scmp.ne.s32.totalorder %s158, %s161
      %p167 = scmp.eq.s32.totalorder %s13, 0
      %p168 = por %p166, %p167
      %p169 = scmp.ne.s32.totalorder %s158, %s161
      %p170 = scmp.eq.s32.totalorder %s18, 1
      %p171 = por %p169, %p170
      %p172 = scmp.ne.s32.totalorder %s161, %s162
      %p173 = scmp.eq.s32.totalorder %s18, 0
      %p174 = por %p172, %p173
      %p175 = scmp.ne.s32.totalorder %s161, %s162
      %p176 = scmp.eq.s32.totalorder %s19, 1
      %p177 = por %p175, %p176
      %p179 = scmp.ne.s32.totalorder %s162, %s178
      %p180 = scmp.eq.s32.totalorder %s19, 0
      %p181 = por %p179, %p180
      %p182 = scmp.le.s32.totalorder 1, %s13
      %p183 = scmp.lt.s32.totalorder %s13, 3
      %p184 = pnand %p182, %p183
      %p185 = pneg %p184
      // Predicated region
      $region9: #{tpu_custom_call.1} parent=5 // pred_check
        _
      $region10: #{tpu_custom_call.1} parent=5 // pred_check_branch
        %187 = sbr.rel (%p184) target = $region12
      $region11: #{tpu_custom_call.1} parent=5 // pred_region
        %s188 = ssub.s32 %s13, 1
        // Predicated region
        $region13: #{tpu_custom_call.1} parent=11 // pred_check
          %p189 = pneg %p118
        $region14: #{tpu_custom_call.1} parent=11 // pred_check_branch
          %191 = sbr.rel (%p189) target = $region16
        $region15: #{tpu_custom_call.1} parent=11 // pred_region
          %p192 = scmp.lt.s32.totalorder %s24, 0
          %s193 = scalar_select %p192, %s24, 0
          %s194 = smul.addr %s193, 4
          %s195 = scalar_lea.vmem %s2, %s194
        $region16: #{tpu_custom_call.1} parent=11 // pred_fallthru
          _
        // Predicated region
        $region17: #{tpu_custom_call.1} parent=11 // pred_check
          %p196 = pneg %p144
        $region18: #{tpu_custom_call.1} parent=11 // pred_check_branch
          %198 = sbr.rel (%p196) target = $region20
        $region19: #{tpu_custom_call.1} parent=11 // pred_region
          %p199 = scmp.lt.s32.totalorder %s24, 0
          %s200 = scalar_select %p199, %s24, 0
          %s201 = scalar_lea.vmem %s3, %s200
        $region20: #{tpu_custom_call.1} parent=11 // pred_fallthru
          _
      $region12: #{tpu_custom_call.1} parent=5 // pred_fallthru
        _
      %p202 = scmp.lt.s32.totalorder %s13, 2
      // Predicated region
      $region21: #{tpu_custom_call.1} parent=5 // pred_check
        %p203 = pneg %p202
      $region22: #{tpu_custom_call.1} parent=5 // pred_check_branch
        %205 = sbr.rel (%p203) target = $region24
      $region23: #{tpu_custom_call.1} parent=5 // pred_region
        // Predicated region
        $region25: #{tpu_custom_call.1} parent=23 // pred_check
          %p206 = pneg %p54
        $region26: #{tpu_custom_call.1} parent=23 // pred_check_branch
          %208 = sbr.rel (%p206) target = $region28
        $region27: #{tpu_custom_call.1} parent=23 // pred_region
          %s209 = smul.u32 16, %s22
          %p210 = scmp.lt.s32.totalorder %s20, 1
          %s211 = scalar_select %p210, %s20, 1
          %p212 = scmp.lt.s32.totalorder %s209, 31
          %s213 = scalar_select %p212, %s209, 31
          %s214 = smul.addr %s213, 3
          %s215 = smul.addr %s211, 96
          %s216 = sadd.s32 %s214, %s215
          %s217 = smul.addr %s216, 4
          %s218 = scalar_lea.vmem %s0, %s217
          %s219 = smul.u32 16, %s22
        $region28: #{tpu_custom_call.1} parent=23 // pred_fallthru
          _
        // Predicated region
        $region29: #{tpu_custom_call.1} parent=23 // pred_check
          %p220 = pneg %p86
        $region30: #{tpu_custom_call.1} parent=23 // pred_check_branch
          %222 = sbr.rel (%p220) target = $region32
        $region31: #{tpu_custom_call.1} parent=23 // pred_region
          %s223 = sadd.s32 %s22, 1
          %s224 = smul.u32 %s223, 8
          %s225 = smul.u32 2, %s224
          %p226 = scmp.lt.s32.totalorder %s20, 1
          %s227 = scalar_select %p226, %s20, 1
          %p228 = scmp.lt.s32.totalorder %s225, 31
          %s229 = scalar_select %p228, %s225, 31
          %s230 = smul.addr %s229, 3
          %s231 = smul.addr %s227, 96
          %s232 = sadd.s32 %s230, %s231
          %s233 = smul.addr %s232, 4
          %s234 = scalar_lea.vmem %s1, %s233
          %s235 = sadd.s32 %s22, 1
          %s236 = smul.u32 %s235, 8
          %s237 = smul.u32 2, %s236
        $region32: #{tpu_custom_call.1} parent=23 // pred_fallthru
          _
      $region24: #{tpu_custom_call.1} parent=5 // pred_fallthru
        _
      %p238 = scmp.le.s32.totalorder 1, %s13
      %p239 = scmp.lt.s32.totalorder %s13, 3
      %p240 = pnand %p238, %p239
      %p241 = pneg %p240
      // Predicated region
      $region33: #{tpu_custom_call.1} parent=5 // pred_check
        _
      $region34: #{tpu_custom_call.1} parent=5 // pred_check_branch
        %243 = sbr.rel (%p240) target = $region36
      $region35: #{tpu_custom_call.1} parent=5 // pred_region
        %s244 = ssub.s32 %s13, 1
        %s245 = smul.u32 16, %s25
        %p246 = scmp.lt.s32.totalorder %s23, 1
        %s247 = scalar_select %p246, %s23, 1
        %p248 = scmp.lt.s32.totalorder %s245, 31
        %s249 = scalar_select %p248, %s245, 31
        %s250 = smul.addr %s249, 3
        %s251 = smul.addr %s247, 96
        %s252 = sadd.s32 %s250, %s251
        %s253 = smul.addr %s252, 4
        %s254 = scalar_lea.vmem %s0, %s253
        %p255 = pneg %p60
        %p256 = pneg %p57
        %s257 = sadd.s32 %s25, 1
        %s258 = smul.u32 %s257, 8
        %s259 = smul.u32 2, %s258
        %p260 = scmp.lt.s32.totalorder %s23, 1
        %s261 = scalar_select %p260, %s23, 1
        %p262 = scmp.lt.s32.totalorder %s259, 31
        %s263 = scalar_select %p262, %s259, 31
        %s264 = smul.addr %s263, 3
        %s265 = smul.addr %s261, 96
        %s266 = sadd.s32 %s264, %s265
        %s267 = smul.addr %s266, 4
        %s268 = scalar_lea.vmem %s1, %s267
        %p269 = pneg %p92
        %p270 = pneg %p89
        %p271 = scmp.lt.s32.totalorder %s24, 0
        %s272 = scalar_select %p271, %s24, 0
        %s273 = smul.addr %s272, 4
        %s274 = scalar_lea.vmem %s2, %s273
        %p275 = pneg %p118
        %p276 = pneg %p115
        %p277 = scmp.lt.s32.totalorder %s24, 0
        %s278 = scalar_select %p277, %s24, 0
        %s279 = scalar_lea.vmem %s3, %s278
        %p280 = pneg %p144
        %p281 = pneg %p141
        %p282 = pneg %p174
        %p283 = pneg %p171
        %s284 = sand.u32 %s161, 1
        %s285 = scalar_lea.sflag [#allocation3], %s284
        %s286 = sand.u32 %s161, 1
        %s287 = smul.addr %s286, 128
        %s288 = scalar_lea.vmem [#allocation2], %s287
        %s289 = smul.u32 16, %s25
        %p290 = scmp.lt.s32.totalorder %s23, 1
        %s291 = scalar_select %p290, %s23, 1
        %p292 = scmp.lt.s32.totalorder %s289, 31
        %s293 = scalar_select %p292, %s289, 31
        %s294 = smul.addr %s293, 3
        %s295 = smul.addr %s291, 96
        %s296 = sadd.s32 %s294, %s295
        %s297 = smul.addr %s296, 4
        %s298 = scalar_lea.vmem %s0, %s297
        %s299 = smul.u32 16, %s25
        %s300 = sadd.s32 %s25, 1
        %s301 = smul.u32 %s300, 8
        %s302 = smul.u32 2, %s301
        %p303 = scmp.lt.s32.totalorder %s23, 1
        %s304 = scalar_select %p303, %s23, 1
        %p305 = scmp.lt.s32.totalorder %s302, 31
        %s306 = scalar_select %p305, %s302, 31
        %s307 = smul.addr %s306, 3
        %s308 = smul.addr %s304, 96
        %s309 = sadd.s32 %s307, %s308
        %s310 = smul.addr %s309, 4
        %s311 = scalar_lea.vmem %s1, %s310
        %s312 = sadd.s32 %s25, 1
        %s313 = smul.u32 %s312, 8
        %s314 = smul.u32 2, %s313
        %p315 = scmp.lt.s32.totalorder %s24, 0
        %s316 = scalar_select %p315, %s24, 0
        %s317 = smul.addr %s316, 4
        %s318 = scalar_lea.vmem %s2, %s317
        %p319 = scmp.lt.s32.totalorder %s24, 0
        %s320 = scalar_select %p319, %s24, 0
        %s321 = scalar_lea.vmem %s3, %s320
        %s322 = smul.u32 16, %s25
        %v324 = vld [vmem:[%s298] sm:$0xf]
        %v325 = vld [vmem:[%s298 + $0x4] sm:$0xf]
        %v326 = vld [vmem:[%s298 + $0x8] sm:$0x1]
        %v327 = vld [vmem:[%s298 + $0xc] sm:$0xf]
        %v328 = vld [vmem:[%s298 + $0x10] sm:$0xf]
        %v329 = vld [vmem:[%s298 + $0x14] sm:$0x1]
        %v330 = vld [vmem:[%s298 + $0x18] sm:$0xf]
        %v331 = vld [vmem:[%s298 + $0x1c] sm:$0xf]
        %v332 = vld [vmem:[%s298 + $0x20] sm:$0x1]
        %v333 = vld [vmem:[%s298 + $0x24] sm:$0xf]
        %v334 = vld [vmem:[%s298 + $0x28] sm:$0xf]
        %v335 = vld [vmem:[%s298 + $0x2c] sm:$0x1]
        %v336 = vld [vmem:[%s298 + $0x30] sm:$0xf]
        %v337 = vld [vmem:[%s298 + $0x34] sm:$0xf]
        %v338 = vld [vmem:[%s298 + $0x38] sm:$0x1]
        %v339 = vld [vmem:[%s298 + $0x3c] sm:$0xf]
        %v340 = vld [vmem:[%s298 + $0x40] sm:$0xf]
        %v341 = vld [vmem:[%s298 + $0x44] sm:$0x1]
        %v342 = vld [vmem:[%s298 + $0x48] sm:$0xf]
        %v343 = vld [vmem:[%s298 + $0x4c] sm:$0xf]
        %v344 = vld [vmem:[%s298 + $0x50] sm:$0x1]
        %v345 = vld [vmem:[%s298 + $0x54] sm:$0xf]
        %v346 = vld [vmem:[%s298 + $0x58] sm:$0xf]
        %v347 = vld [vmem:[%s298 + $0x5c] sm:$0x1]
        %v348 = vld [vmem:[%s298 + $0x60] sm:$0xf]
        %v349 = vld [vmem:[%s298 + $0x64] sm:$0xf]
        %v350 = vld [vmem:[%s298 + $0x68] sm:$0x1]
        %v351 = vld [vmem:[%s298 + $0x6c] sm:$0xf]
        %v352 = vld [vmem:[%s298 + $0x70] sm:$0xf]
        %v353 = vld [vmem:[%s298 + $0x74] sm:$0x1]
        %v354 = vld [vmem:[%s298 + $0x78] sm:$0xf]
        %v355 = vld [vmem:[%s298 + $0x7c] sm:$0xf]
        %v356 = vld [vmem:[%s298 + $0x80] sm:$0x1]
        %v357 = vld [vmem:[%s298 + $0x84] sm:$0xf]
        %v358 = vld [vmem:[%s298 + $0x88] sm:$0xf]
        %v359 = vld [vmem:[%s298 + $0x8c] sm:$0x1]
        %v360 = vld [vmem:[%s298 + $0x90] sm:$0xf]
        %v361 = vld [vmem:[%s298 + $0x94] sm:$0xf]
        %v362 = vld [vmem:[%s298 + $0x98] sm:$0x1]
        %v363 = vld [vmem:[%s298 + $0x9c] sm:$0xf]
        %v364 = vld [vmem:[%s298 + $0xa0] sm:$0xf]
        %v365 = vld [vmem:[%s298 + $0xa4] sm:$0x1]
        %v366 = vld [vmem:[%s298 + $0xa8] sm:$0xf]
        %v367 = vld [vmem:[%s298 + $0xac] sm:$0xf]
        %v368 = vld [vmem:[%s298 + $0xb0] sm:$0x1]
        %v369 = vld [vmem:[%s298 + $0xb4] sm:$0xf]
        %v370 = vld [vmem:[%s298 + $0xb8] sm:$0xf]
        %v371 = vld [vmem:[%s298 + $0xbc] sm:$0x1]
        %v372 = vld [vmem:[%s311] sm:$0xf]
        %v373 = vld [vmem:[%s311 + $0x4] sm:$0xf]
        %v374 = vld [vmem:[%s311 + $0x8] sm:$0x1]
        %v375 = vld [vmem:[%s311 + $0xc] sm:$0xf]
        %v376 = vld [vmem:[%s311 + $0x10] sm:$0xf]
        %v377 = vld [vmem:[%s311 + $0x14] sm:$0x1]
        %v414 = vunpack.c.l.b16 %v324
        %v415 = vunpack.c.l.b16 %v325
        %v416 = vunpack.c.l.b16 %v327
        %v417 = vunpack.c.l.b16 %v328
        %v418 = vunpack.c.l.b16 %v330
        %v419 = vunpack.c.l.b16 %v331
        %v420 = vunpack.c.l.b16 %v333
        %v421 = vunpack.c.l.b16 %v334
        %v422 = vunpack.c.l.b16 %v336
        %v423 = vunpack.c.l.b16 %v337
        %v424 = vunpack.c.l.b16 %v339
        %v425 = vunpack.c.l.b16 %v340
        %v426 = vunpack.c.l.b16 %v342
        %v427 = vunpack.c.l.b16 %v343
        %v428 = vunpack.c.l.b16 %v345
        %v429 = vunpack.c.l.b16 %v346
        %v430 = vunpack.c.l.b16 %v348
        %v431 = vunpack.c.l.b16 %v349
        %v432 = vunpack.c.l.b16 %v351
        %v433 = vunpack.c.l.b16 %v352
        %v434 = vunpack.c.l.b16 %v354
        %v435 = vunpack.c.l.b16 %v355
        %v436 = vunpack.c.l.b16 %v357
        %v437 = vunpack.c.l.b16 %v358
        %v438 = vunpack.c.l.b16 %v360
        %v439 = vunpack.c.l.b16 %v361
        %v440 = vunpack.c.l.b16 %v363
        %v441 = vunpack.c.l.b16 %v364
        %v442 = vunpack.c.l.b16 %v366
        %v443 = vunpack.c.l.b16 %v367
        %v444 = vunpack.c.l.b16 %v369
        %v445 = vunpack.c.l.b16 %v370
        %v446 = vunpack.c.l.b16 %v372
        %v447 = vunpack.c.l.b16 %v373
        %v448 = vunpack.c.l.b16 %v375
        %v449 = vunpack.c.l.b16 %v376
        %v450 = vpack.c.b16 %v415, %v414
        %v451 = vpack.c.b16 %v417, %v416
        %v452 = vpack.c.b16 %v419, %v418
        %v453 = vpack.c.b16 %v421, %v420
        %v454 = vpack.c.b16 %v423, %v422
        %v455 = vpack.c.b16 %v425, %v424
        %v456 = vpack.c.b16 %v427, %v426
        %v457 = vpack.c.b16 %v429, %v428
        %v458 = vpack.c.b16 %v431, %v430
        %v459 = vpack.c.b16 %v433, %v432
        %v460 = vpack.c.b16 %v435, %v434
        %v461 = vpack.c.b16 %v437, %v436
        %v462 = vpack.c.b16 %v439, %v438
        %v463 = vpack.c.b16 %v441, %v440
        %v464 = vpack.c.b16 %v443, %v442
        %v465 = vpack.c.b16 %v445, %v444
        %v466 = vpack.c.b16 %v447, %v446
        %v467 = vpack.c.b16 %v449, %v448
        %v486 = vunpack.c.l.b16 %v326
        %v487 = vunpack.c.l.b16 %v329
        %v488 = vunpack.c.l.b16 %v332
        %v489 = vunpack.c.l.b16 %v335
        %v490 = vunpack.c.l.b16 %v338
        %v491 = vunpack.c.l.b16 %v341
        %v492 = vunpack.c.l.b16 %v344
        %v493 = vunpack.c.l.b16 %v347
        %v494 = vunpack.c.l.b16 %v350
        %v495 = vunpack.c.l.b16 %v353
        %v496 = vunpack.c.l.b16 %v356
        %v497 = vunpack.c.l.b16 %v359
        %v498 = vunpack.c.l.b16 %v362
        %v499 = vunpack.c.l.b16 %v365
        %v500 = vunpack.c.l.b16 %v368
        %v501 = vunpack.c.l.b16 %v371
        %v502 = vunpack.c.l.b16 %v374
        %v503 = vunpack.c.l.b16 %v377
        %v504 = vpack.c.b16 %v486, %v486
        %v505 = vpack.c.b16 %v487, %v487
        %v506 = vpack.c.b16 %v488, %v488
        %v507 = vpack.c.b16 %v489, %v489
        %v508 = vpack.c.b16 %v490, %v490
        %v509 = vpack.c.b16 %v491, %v491
        %v510 = vpack.c.b16 %v492, %v492
        %v511 = vpack.c.b16 %v493, %v493
        %v512 = vpack.c.b16 %v494, %v494
        %v513 = vpack.c.b16 %v495, %v495
        %v514 = vpack.c.b16 %v496, %v496
        %v515 = vpack.c.b16 %v497, %v497
        %v516 = vpack.c.b16 %v498, %v498
        %v517 = vpack.c.b16 %v499, %v499
        %v518 = vpack.c.b16 %v500, %v500
        %v519 = vpack.c.b16 %v501, %v501
        %v520 = vpack.c.b16 %v502, %v502
        %v521 = vpack.c.b16 %v503, %v503
        %vm522 = vsmask.f32 7424
        %v524 = vshrl.u32 %v450, 16
        %v526 = vshll.u32 %v450, 16
        %v528 = vrot.slane %v526, 1
        %v529 = vor.u32 %v524, %v528
        %v531 = vshll.u32 %v504, 16
        %v533 = vrot.slane %v531, 1
        %v534 = vsel %vm522, %v529, %v533
        %v536 = vshrl.u32 %v451, 16
        %v538 = vshll.u32 %v451, 16
        %v540 = vrot.slane %v538, 1
        %v541 = vor.u32 %v536, %v540
        %v543 = vshll.u32 %v505, 16
        %v545 = vrot.slane %v543, 1
        %v546 = vsel %vm522, %v541, %v545
        %v548 = vshrl.u32 %v452, 16
        %v550 = vshll.u32 %v452, 16
        %v552 = vrot.slane %v550, 1
        %v553 = vor.u32 %v548, %v552
        %v555 = vshll.u32 %v506, 16
        %v557 = vrot.slane %v555, 1
        %v558 = vsel %vm522, %v553, %v557
        %v560 = vshrl.u32 %v453, 16
        %v562 = vshll.u32 %v453, 16
        %v564 = vrot.slane %v562, 1
        %v565 = vor.u32 %v560, %v564
        %v567 = vshll.u32 %v507, 16
        %v569 = vrot.slane %v567, 1
        %v570 = vsel %vm522, %v565, %v569
        %v572 = vshrl.u32 %v454, 16
        %v574 = vshll.u32 %v454, 16
        %v576 = vrot.slane %v574, 1
        %v577 = vor.u32 %v572, %v576
        %v579 = vshll.u32 %v508, 16
        %v581 = vrot.slane %v579, 1
        %v582 = vsel %vm522, %v577, %v581
        %v584 = vshrl.u32 %v455, 16
        %v586 = vshll.u32 %v455, 16
        %v588 = vrot.slane %v586, 1
        %v589 = vor.u32 %v584, %v588
        %v591 = vshll.u32 %v509, 16
        %v593 = vrot.slane %v591, 1
        %v594 = vsel %vm522, %v589, %v593
        %v596 = vshrl.u32 %v456, 16
        %v598 = vshll.u32 %v456, 16
        %v600 = vrot.slane %v598, 1
        %v601 = vor.u32 %v596, %v600
        %v603 = vshll.u32 %v510, 16
        %v605 = vrot.slane %v603, 1
        %v606 = vsel %vm522, %v601, %v605
        %v608 = vshrl.u32 %v457, 16
        %v610 = vshll.u32 %v457, 16
        %v612 = vrot.slane %v610, 1
        %v613 = vor.u32 %v608, %v612
        %v615 = vshll.u32 %v511, 16
        %v617 = vrot.slane %v615, 1
        %v618 = vsel %vm522, %v613, %v617
        %v620 = vshrl.u32 %v458, 16
        %v622 = vshll.u32 %v458, 16
        %v624 = vrot.slane %v622, 1
        %v625 = vor.u32 %v620, %v624
        %v627 = vshll.u32 %v512, 16
        %v629 = vrot.slane %v627, 1
        %v630 = vsel %vm522, %v625, %v629
        %v632 = vshrl.u32 %v459, 16
        %v634 = vshll.u32 %v459, 16
        %v636 = vrot.slane %v634, 1
        %v637 = vor.u32 %v632, %v636
        %v639 = vshll.u32 %v513, 16
        %v641 = vrot.slane %v639, 1
        %v642 = vsel %vm522, %v637, %v641
        %v644 = vshrl.u32 %v460, 16
        %v646 = vshll.u32 %v460, 16
        %v648 = vrot.slane %v646, 1
        %v649 = vor.u32 %v644, %v648
        %v651 = vshll.u32 %v514, 16
        %v653 = vrot.slane %v651, 1
        %v654 = vsel %vm522, %v649, %v653
        %v656 = vshrl.u32 %v461, 16
        %v658 = vshll.u32 %v461, 16
        %v660 = vrot.slane %v658, 1
        %v661 = vor.u32 %v656, %v660
        %v663 = vshll.u32 %v515, 16
        %v665 = vrot.slane %v663, 1
        %v666 = vsel %vm522, %v661, %v665
        %v668 = vshrl.u32 %v462, 16
        %v670 = vshll.u32 %v462, 16
        %v672 = vrot.slane %v670, 1
        %v673 = vor.u32 %v668, %v672
        %v675 = vshll.u32 %v516, 16
        %v677 = vrot.slane %v675, 1
        %v678 = vsel %vm522, %v673, %v677
        %v680 = vshrl.u32 %v463, 16
        %v682 = vshll.u32 %v463, 16
        %v684 = vrot.slane %v682, 1
        %v685 = vor.u32 %v680, %v684
        %v687 = vshll.u32 %v517, 16
        %v689 = vrot.slane %v687, 1
        %v690 = vsel %vm522, %v685, %v689
        %v692 = vshrl.u32 %v464, 16
        %v694 = vshll.u32 %v464, 16
        %v696 = vrot.slane %v694, 1
        %v697 = vor.u32 %v692, %v696
        %v699 = vshll.u32 %v518, 16
        %v701 = vrot.slane %v699, 1
        %v702 = vsel %vm522, %v697, %v701
        %v704 = vshrl.u32 %v465, 16
        %v706 = vshll.u32 %v465, 16
        %v708 = vrot.slane %v706, 1
        %v709 = vor.u32 %v704, %v708
        %v711 = vshll.u32 %v519, 16
        %v713 = vrot.slane %v711, 1
        %v714 = vsel %vm522, %v709, %v713
        %v716 = vshrl.u32 %v466, 16
        %v718 = vshll.u32 %v466, 16
        %v720 = vrot.slane %v718, 1
        %v721 = vor.u32 %v716, %v720
        %v723 = vshll.u32 %v520, 16
        %v725 = vrot.slane %v723, 1
        %v726 = vsel %vm522, %v721, %v725
        %v728 = vshrl.u32 %v467, 16
        %v730 = vshll.u32 %v467, 16
        %v732 = vrot.slane %v730, 1
        %v733 = vor.u32 %v728, %v732
        %v735 = vshll.u32 %v521, 16
        %v737 = vrot.slane %v735, 1
        %v738 = vsel %vm522, %v733, %v737
        %739 = vrot.lane.b32.xlu0 %v534, 4
        %v740 = vpop.permute.xlu0 %739
        %741 = vrot.lane.b32.xlu0 %v546, 4
        %v742 = vpop.permute.xlu0 %741
        %743 = vrot.lane.b32.xlu0 %v558, 4
        %v744 = vpop.permute.xlu0 %743
        %745 = vrot.lane.b32.xlu0 %v570, 4
        %v746 = vpop.permute.xlu0 %745
        %747 = vrot.lane.b32.xlu0 %v582, 4
        %v748 = vpop.permute.xlu0 %747
        %749 = vrot.lane.b32.xlu0 %v594, 4
        %v750 = vpop.permute.xlu0 %749
        %751 = vrot.lane.b32.xlu0 %v606, 4
        %v752 = vpop.permute.xlu0 %751
        %753 = vrot.lane.b32.xlu0 %v618, 4
        %v754 = vpop.permute.xlu0 %753
        %755 = vrot.lane.b32.xlu0 %v630, 4
        %v756 = vpop.permute.xlu0 %755
        %757 = vrot.lane.b32.xlu0 %v642, 4
        %v758 = vpop.permute.xlu0 %757
        %759 = vrot.lane.b32.xlu0 %v654, 4
        %v760 = vpop.permute.xlu0 %759
        %761 = vrot.lane.b32.xlu0 %v666, 4
        %v762 = vpop.permute.xlu0 %761
        %763 = vrot.lane.b32.xlu0 %v678, 4
        %v764 = vpop.permute.xlu0 %763
        %765 = vrot.lane.b32.xlu0 %v690, 4
        %v766 = vpop.permute.xlu0 %765
        %767 = vrot.lane.b32.xlu0 %v702, 4
        %v768 = vpop.permute.xlu0 %767
        %769 = vrot.lane.b32.xlu0 %v714, 4
        %v770 = vpop.permute.xlu0 %769
        %771 = vrot.lane.b32.xlu0 %v726, 4
        %v772 = vpop.permute.xlu0 %771
        %773 = vrot.lane.b32.xlu0 %v738, 4
        %v774 = vpop.permute.xlu0 %773
        %vm775 = vcmask 1046528
        %v776 = vrot.slane %v450, 1
        %v777 = vrot.slane %v504, 1
        %v778 = vsel %vm775, %v776, %v777
        %v779 = vrot.slane %v451, 1
        %v780 = vrot.slane %v505, 1
        %v781 = vsel %vm775, %v779, %v780
        %v782 = vrot.slane %v452, 1
        %v783 = vrot.slane %v506, 1
        %v784 = vsel %vm775, %v782, %v783
        %v785 = vrot.slane %v453, 1
        %v786 = vrot.slane %v507, 1
        %v787 = vsel %vm775, %v785, %v786
        %v788 = vrot.slane %v454, 1
        %v789 = vrot.slane %v508, 1
        %v790 = vsel %vm775, %v788, %v789
        %v791 = vrot.slane %v455, 1
        %v792 = vrot.slane %v509, 1
        %v793 = vsel %vm775, %v791, %v792
        %v794 = vrot.slane %v456, 1
        %v795 = vrot.slane %v510, 1
        %v796 = vsel %vm775, %v794, %v795
        %v797 = vrot.slane %v457, 1
        %v798 = vrot.slane %v511, 1
        %v799 = vsel %vm775, %v797, %v798
        %v800 = vrot.slane %v458, 1
        %v801 = vrot.slane %v512, 1
        %v802 = vsel %vm775, %v800, %v801
        %v803 = vrot.slane %v459, 1
        %v804 = vrot.slane %v513, 1
        %v805 = vsel %vm775, %v803, %v804
        %v806 = vrot.slane %v460, 1
        %v807 = vrot.slane %v514, 1
        %v808 = vsel %vm775, %v806, %v807
        %v809 = vrot.slane %v461, 1
        %v810 = vrot.slane %v515, 1
        %v811 = vsel %vm775, %v809, %v810
        %v812 = vrot.slane %v462, 1
        %v813 = vrot.slane %v516, 1
        %v814 = vsel %vm775, %v812, %v813
        %v815 = vrot.slane %v463, 1
        %v816 = vrot.slane %v517, 1
        %v817 = vsel %vm775, %v815, %v816
        %v818 = vrot.slane %v464, 1
        %v819 = vrot.slane %v518, 1
        %v820 = vsel %vm775, %v818, %v819
        %v821 = vrot.slane %v465, 1
        %v822 = vrot.slane %v519, 1
        %v823 = vsel %vm775, %v821, %v822
        %v824 = vrot.slane %v466, 1
        %v825 = vrot.slane %v520, 1
        %v826 = vsel %vm775, %v824, %v825
        %v827 = vrot.slane %v467, 1
        %v828 = vrot.slane %v521, 1
        %v829 = vsel %vm775, %v827, %v828
        %830 = vrot.lane.b32.xlu0 %v778, 8
        %v831 = vpop.permute.xlu0 %830
        %832 = vrot.lane.b32.xlu0 %v781, 8
        %v833 = vpop.permute.xlu0 %832
        %834 = vrot.lane.b32.xlu0 %v784, 8
        %v835 = vpop.permute.xlu0 %834
        %836 = vrot.lane.b32.xlu0 %v787, 8
        %v837 = vpop.permute.xlu0 %836
        %838 = vrot.lane.b32.xlu0 %v790, 8
        %v839 = vpop.permute.xlu0 %838
        %840 = vrot.lane.b32.xlu0 %v793, 8
        %v841 = vpop.permute.xlu0 %840
        %842 = vrot.lane.b32.xlu0 %v796, 8
        %v843 = vpop.permute.xlu0 %842
        %844 = vrot.lane.b32.xlu0 %v799, 8
        %v845 = vpop.permute.xlu0 %844
        %846 = vrot.lane.b32.xlu0 %v802, 8
        %v847 = vpop.permute.xlu0 %846
        %848 = vrot.lane.b32.xlu0 %v805, 8
        %v849 = vpop.permute.xlu0 %848
        %850 = vrot.lane.b32.xlu0 %v808, 8
        %v851 = vpop.permute.xlu0 %850
        %852 = vrot.lane.b32.xlu0 %v811, 8
        %v853 = vpop.permute.xlu0 %852
        %854 = vrot.lane.b32.xlu0 %v814, 8
        %v855 = vpop.permute.xlu0 %854
        %856 = vrot.lane.b32.xlu0 %v817, 8
        %v857 = vpop.permute.xlu0 %856
        %858 = vrot.lane.b32.xlu0 %v820, 8
        %v859 = vpop.permute.xlu0 %858
        %860 = vrot.lane.b32.xlu0 %v823, 8
        %v861 = vpop.permute.xlu0 %860
        %862 = vrot.lane.b32.xlu0 %v826, 8
        %v863 = vpop.permute.xlu0 %862
        %864 = vrot.lane.b32.xlu0 %v829, 8
        %v865 = vpop.permute.xlu0 %864
        %vm866 = vcmask 31744
        %v868 = vsel %vm866, %v450, %v740
        %v870 = vsel %vm866, %v451, %v742
        %v872 = vsel %vm866, %v452, %v744
        %v874 = vsel %vm866, %v453, %v746
        %v876 = vsel %vm866, %v454, %v748
        %v878 = vsel %vm866, %v455, %v750
        %v880 = vsel %vm866, %v456, %v752
        %v882 = vsel %vm866, %v457, %v754
        %v884 = vsel %vm866, %v458, %v756
        %v886 = vsel %vm866, %v459, %v758
        %v888 = vsel %vm866, %v460, %v760
        %v890 = vsel %vm866, %v461, %v762
        %v892 = vsel %vm866, %v462, %v764
        %v894 = vsel %vm866, %v463, %v766
        %v896 = vsel %vm866, %v464, %v768
        %v898 = vsel %vm866, %v465, %v770
        %v900 = vsel %vm866, %v466, %v772
        %v902 = vsel %vm866, %v467, %v774
        %vm903 = vcmask 64512
        %v905 = vsel %vm903, %v868, %v831
        %v907 = vsel %vm903, %v870, %v833
        %v909 = vsel %vm903, %v872, %v835
        %v911 = vsel %vm903, %v874, %v837
        %v913 = vsel %vm903, %v876, %v839
        %v915 = vsel %vm903, %v878, %v841
        %v917 = vsel %vm903, %v880, %v843
        %v919 = vsel %vm903, %v882, %v845
        %v921 = vsel %vm903, %v884, %v847
        %v923 = vsel %vm903, %v886, %v849
        %v925 = vsel %vm903, %v888, %v851
        %v927 = vsel %vm903, %v890, %v853
        %v929 = vsel %vm903, %v892, %v855
        %v931 = vsel %vm903, %v894, %v857
        %v933 = vsel %vm903, %v896, %v859
        %v935 = vsel %vm903, %v898, %v861
        %v937 = vsel %vm903, %v900, %v863
        %v939 = vsel %vm903, %v902, %v865
        %956 = vrot.lane.b32.xlu0 %v907, 12
        %v957 = vpop.permute.xlu0 %956
        %958 = vrot.lane.b32.xlu0 %v909, 12
        %v959 = vpop.permute.xlu0 %958
        %960 = vrot.lane.b32.xlu0 %v911, 12
        %v961 = vpop.permute.xlu0 %960
        %962 = vrot.lane.b32.xlu0 %v913, 12
        %v963 = vpop.permute.xlu0 %962
        %964 = vrot.lane.b32.xlu0 %v915, 12
        %v965 = vpop.permute.xlu0 %964
        %966 = vrot.lane.b32.xlu0 %v917, 12
        %v967 = vpop.permute.xlu0 %966
        %968 = vrot.lane.b32.xlu0 %v919, 12
        %v969 = vpop.permute.xlu0 %968
        %970 = vrot.lane.b32.xlu0 %v921, 12
        %v971 = vpop.permute.xlu0 %970
        %972 = vrot.lane.b32.xlu0 %v923, 12
        %v973 = vpop.permute.xlu0 %972
        %974 = vrot.lane.b32.xlu0 %v925, 12
        %v975 = vpop.permute.xlu0 %974
        %976 = vrot.lane.b32.xlu0 %v927, 12
        %v977 = vpop.permute.xlu0 %976
        %978 = vrot.lane.b32.xlu0 %v929, 12
        %v979 = vpop.permute.xlu0 %978
        %980 = vrot.lane.b32.xlu0 %v931, 12
        %v981 = vpop.permute.xlu0 %980
        %982 = vrot.lane.b32.xlu0 %v933, 12
        %v983 = vpop.permute.xlu0 %982
        %984 = vrot.lane.b32.xlu0 %v935, 12
        %v985 = vpop.permute.xlu0 %984
        %986 = vrot.lane.b32.xlu0 %v937, 12
        %v987 = vpop.permute.xlu0 %986
        %989 = vrot.lane.b32.xlu0 %v909, 24
        %v990 = vpop.permute.xlu0 %989
        %991 = vrot.lane.b32.xlu0 %v911, 24
        %v992 = vpop.permute.xlu0 %991
        %993 = vrot.lane.b32.xlu0 %v913, 24
        %v994 = vpop.permute.xlu0 %993
        %995 = vrot.lane.b32.xlu0 %v915, 24
        %v996 = vpop.permute.xlu0 %995
        %997 = vrot.lane.b32.xlu0 %v917, 24
        %v998 = vpop.permute.xlu0 %997
        %999 = vrot.lane.b32.xlu0 %v919, 24
        %v1000 = vpop.permute.xlu0 %999
        %1001 = vrot.lane.b32.xlu0 %v921, 24
        %v1002 = vpop.permute.xlu0 %1001
        %1003 = vrot.lane.b32.xlu0 %v923, 24
        %v1004 = vpop.permute.xlu0 %1003
        %1005 = vrot.lane.b32.xlu0 %v925, 24
        %v1006 = vpop.permute.xlu0 %1005
        %1007 = vrot.lane.b32.xlu0 %v927, 24
        %v1008 = vpop.permute.xlu0 %1007
        %1009 = vrot.lane.b32.xlu0 %v929, 24
        %v1010 = vpop.permute.xlu0 %1009
        %1011 = vrot.lane.b32.xlu0 %v931, 24
        %v1012 = vpop.permute.xlu0 %1011
        %1013 = vrot.lane.b32.xlu0 %v933, 24
        %v1014 = vpop.permute.xlu0 %1013
        %1015 = vrot.lane.b32.xlu0 %v935, 24
        %v1016 = vpop.permute.xlu0 %1015
        %1017 = vrot.lane.b32.xlu0 %v937, 24
        %v1018 = vpop.permute.xlu0 %1017
        %1019 = vrot.lane.b32.xlu0 %v939, 24
        %v1020 = vpop.permute.xlu0 %1019
        %vm1021 = vcmask 97280
        %v1023 = vsel %vm1021, %v905, %v957
        %v1025 = vsel %vm1021, %v907, %v959
        %v1027 = vsel %vm1021, %v909, %v961
        %v1029 = vsel %vm1021, %v911, %v963
        %v1031 = vsel %vm1021, %v913, %v965
        %v1033 = vsel %vm1021, %v915, %v967
        %v1035 = vsel %vm1021, %v917, %v969
        %v1037 = vsel %vm1021, %v919, %v971
        %v1039 = vsel %vm1021, %v921, %v973
        %v1041 = vsel %vm1021, %v923, %v975
        %v1043 = vsel %vm1021, %v925, %v977
        %v1045 = vsel %vm1021, %v927, %v979
        %v1047 = vsel %vm1021, %v929, %v981
        %v1049 = vsel %vm1021, %v931, %v983
        %v1051 = vsel %vm1021, %v933, %v985
        %v1053 = vsel %vm1021, %v935, %v987
        %vm1054 = vcmask 195584
        %v1056 = vsel %vm1054, %v1023, %v990
        %v1058 = vsel %vm1054, %v1025, %v992
        %v1060 = vsel %vm1054, %v1027, %v994
        %v1062 = vsel %vm1054, %v1029, %v996
        %v1064 = vsel %vm1054, %v1031, %v998
        %v1066 = vsel %vm1054, %v1033, %v1000
        %v1068 = vsel %vm1054, %v1035, %v1002
        %v1070 = vsel %vm1054, %v1037, %v1004
        %v1072 = vsel %vm1054, %v1039, %v1006
        %v1074 = vsel %vm1054, %v1041, %v1008
        %v1076 = vsel %vm1054, %v1043, %v1010
        %v1078 = vsel %vm1054, %v1045, %v1012
        %v1080 = vsel %vm1054, %v1047, %v1014
        %v1082 = vsel %vm1054, %v1049, %v1016
        %v1084 = vsel %vm1054, %v1051, %v1018
        %v1086 = vsel %vm1054, %v1053, %v1020
        %v1087 = vld [vmem:[%s318] sm:$0xf]
        %v1088 = vld [vmem:[%s318 + $0x4] sm:$0xf]
        %v1089 = vld [vmem:[%s318 + $0x8] sm:$0xf]
        %v1090 = vld [vmem:[%s318 + $0xc] sm:$0xf]
        %v1091 = vld [vmem:[%s318 + $0x10] sm:$0x3]
        %v1092 = vld [vmem:[%s321] sm:$0x1]
        %v1094 = vlaneseq
        %v1095 = vshrl.u32 %v1094, 7
        %v1096 = vsub.s32 0, %v1095
        %v1097 = vrot.slane %v1092, %v1096
        %v1104 = vunpack.c.l.b16 %v1087
        %v1105 = vunpack.c.l.b16 %v1088
        %v1106 = vunpack.c.l.b16 %v1089
        %v1107 = vunpack.c.l.b16 %v1090
        %v1108 = vunpack.c.l.b16 %v1091
        %v1109 = vpack.c.b16 %v1105, %v1104
        %v1110 = vpack.c.b16 %v1107, %v1106
        %v1111 = vpack.c.b16 %v1108, %v1108
        %vm1114 = vcmask 293888
        %v1115 = vsel %vm1114, %v1056, 0
        %v1117 = vsel %vm1114, %v1058, 0
        %v1119 = vsel %vm1114, %v1060, 0
        %v1121 = vsel %vm1114, %v1062, 0
        %v1123 = vsel %vm1114, %v1064, 0
        %v1125 = vsel %vm1114, %v1066, 0
        %v1127 = vsel %vm1114, %v1068, 0
        %v1129 = vsel %vm1114, %v1070, 0
        %v1131 = vsel %vm1114, %v1072, 0
        %v1133 = vsel %vm1114, %v1074, 0
        %v1135 = vsel %vm1114, %v1076, 0
        %v1137 = vsel %vm1114, %v1078, 0
        %v1139 = vsel %vm1114, %v1080, 0
        %v1141 = vsel %vm1114, %v1082, 0
        %v1143 = vsel %vm1114, %v1084, 0
        %v1145 = vsel %vm1114, %v1086, 0
        %vm1147 = vcmask 1041408
        %v1149 = vsel %vm1147, %v1111, 0
        %1151 = vmatprep.subr.bf16.mxu0 0
        %1152 = vmatpush1.bf16.msra.mxu0 %v1109
        %1153 = vmatprep.subr.bf16.mxu0 0
        %1154 = vmatpush1.bf16.msra.mxu0 %v1110
        %1155 = vmatprep.subr.bf16.mxu0 0
        %1156 = vmatpush1.bf16.msra.mxu0 %v1149
        %1157 = vmatprep.subr.bf16.mxu0 0
        %1158 = vmatpush1.bf16.msra.mxu0 0
        %1159 = vmatprep.subr.bf16.mxu0 0
        %1160 = vmatpush1.bf16.msra.mxu0 0
        %1161 = vmatprep.subr.bf16.mxu0 0
        %1162 = vmatpush1.bf16.msra.mxu0 0
        %1163 = vmatprep.subr.bf16.mxu0 0
        %1164 = vmatpush1.bf16.msra.mxu0 0
        %1165 = vmatprep.subr.bf16.mxu0 0
        %1166 = vmatpush1.bf16.msra.mxu0 0
        %1167 = vmatprep.subr.bf16.mxu0 0
        %1168 = vmatpush1.bf16.msra.mxu0 0
        %1169 = vmatprep.subr.bf16.mxu0 0
        %1170 = vmatpush1.bf16.msra.mxu0 0
        %1171 = vmatprep.subr.bf16.mxu0 0
        %1172 = vmatpush1.bf16.msra.mxu0 0
        %1173 = vmatprep.subr.bf16.mxu0 0
        %1174 = vmatpush1.bf16.msra.mxu0 0
        %1175 = vmatprep.subr.bf16.mxu0 0
        %1176 = vmatpush1.bf16.msra.mxu0 0
        %1177 = vmatprep.subr.bf16.mxu0 0
        %1178 = vmatpush1.bf16.msra.mxu0 0
        %1179 = vmatprep.subr.bf16.mxu0 0
        %1180 = vmatpush1.bf16.msra.mxu0 0
        %1181 = vmatprep.subr.bf16.mxu0 0
        %1182 = vmatpush1.bf16.msra.mxu0 0
        %1183 = vmatprep.mubr.bf16.mxu0 0
        %1184 = vmatmul.mubr.bf16.gmra.mrb[0].mxu0 %v1115
        %v1185 = vpop.f32.mrb[0].mxu0
        %v1186 = vadd.f32 %v1097, %v1185
        %v1187 = vpop.f32.mrb[0].mxu0
        %v1188 = vpop.f32.mrb[0].mxu0
        %v1189 = vadd.f32 %v1097, %v1188
        %v1190 = vpop.f32.mrb[0].mxu0
        %1191 = vmatprep.mubr.bf16.mxu0 0
        %1192 = vmatmul.mubr.bf16.gmra.mrb[0].mxu0 %v1117
        %v1193 = vpop.f32.mrb[0].mxu0
        %v1194 = vadd.f32 %v1097, %v1193
        %v1195 = vpop.f32.mrb[0].mxu0
        %v1196 = vpop.f32.mrb[0].mxu0
        %v1197 = vadd.f32 %v1097, %v1196
        %v1198 = vpop.f32.mrb[0].mxu0
        %1199 = vmatprep.mubr.bf16.mxu0 0
        %1200 = vmatmul.mubr.bf16.gmra.mrb[0].mxu0 %v1119
        %v1201 = vpop.f32.mrb[0].mxu0
        %v1202 = vadd.f32 %v1097, %v1201
        %v1203 = vpop.f32.mrb[0].mxu0
        %v1204 = vpop.f32.mrb[0].mxu0
        %v1205 = vadd.f32 %v1097, %v1204
        %v1206 = vpop.f32.mrb[0].mxu0
        %1207 = vmatprep.mubr.bf16.mxu0 0
        %1208 = vmatmul.mubr.bf16.gmra.mrb[0].mxu0 %v1121
        %v1209 = vpop.f32.mrb[0].mxu0
        %v1210 = vadd.f32 %v1097, %v1209
        %v1211 = vpop.f32.mrb[0].mxu0
        %v1212 = vpop.f32.mrb[0].mxu0
        %v1213 = vadd.f32 %v1097, %v1212
        %v1214 = vpop.f32.mrb[0].mxu0
        %1215 = vmatprep.mubr.bf16.mxu0 0
        %1216 = vmatmul.mubr.bf16.gmra.mrb[0].mxu0 %v1123
        %v1217 = vpop.f32.mrb[0].mxu0
        %v1218 = vadd.f32 %v1097, %v1217
        %v1219 = vpop.f32.mrb[0].mxu0
        %v1220 = vpop.f32.mrb[0].mxu0
        %v1221 = vadd.f32 %v1097, %v1220
        %v1222 = vpop.f32.mrb[0].mxu0
        %1223 = vmatprep.mubr.bf16.mxu0 0
        %1224 = vmatmul.mubr.bf16.gmra.mrb[0].mxu0 %v1125
        %v1225 = vpop.f32.mrb[0].mxu0
        %v1226 = vadd.f32 %v1097, %v1225
        %v1227 = vpop.f32.mrb[0].mxu0
        %v1228 = vpop.f32.mrb[0].mxu0
        %v1229 = vadd.f32 %v1097, %v1228
        %v1230 = vpop.f32.mrb[0].mxu0
        %1231 = vmatprep.mubr.bf16.mxu0 0
        %1232 = vmatmul.mubr.bf16.gmra.mrb[0].mxu0 %v1127
        %v1233 = vpop.f32.mrb[0].mxu0
        %v1234 = vadd.f32 %v1097, %v1233
        %v1235 = vpop.f32.mrb[0].mxu0
        %v1236 = vpop.f32.mrb[0].mxu0
        %v1237 = vadd.f32 %v1097, %v1236
        %v1238 = vpop.f32.mrb[0].mxu0
        %1239 = vmatprep.mubr.bf16.mxu0 0
        %1240 = vmatmul.mubr.bf16.gmra.mrb[0].mxu0 %v1129
        %v1241 = vpop.f32.mrb[0].mxu0
        %v1242 = vadd.f32 %v1097, %v1241
        %v1243 = vpop.f32.mrb[0].mxu0
        %v1244 = vpop.f32.mrb[0].mxu0
        %v1245 = vadd.f32 %v1097, %v1244
        %v1246 = vpop.f32.mrb[0].mxu0
        %1247 = vmatprep.mubr.bf16.mxu0 0
        %1248 = vmatmul.mubr.bf16.gmra.mrb[0].mxu0 %v1131
        %v1249 = vpop.f32.mrb[0].mxu0
        %v1250 = vadd.f32 %v1097, %v1249
        %v1251 = vpop.f32.mrb[0].mxu0
        %v1252 = vpop.f32.mrb[0].mxu0
        %v1253 = vadd.f32 %v1097, %v1252
        %v1254 = vpop.f32.mrb[0].mxu0
        %1255 = vmatprep.mubr.bf16.mxu0 0
        %1256 = vmatmul.mubr.bf16.gmra.mrb[0].mxu0 %v1133
        %v1257 = vpop.f32.mrb[0].mxu0
        %v1258 = vadd.f32 %v1097, %v1257
        %v1259 = vpop.f32.mrb[0].mxu0
        %v1260 = vpop.f32.mrb[0].mxu0
        %v1261 = vadd.f32 %v1097, %v1260
        %v1262 = vpop.f32.mrb[0].mxu0
        %1263 = vmatprep.mubr.bf16.mxu0 0
        %1264 = vmatmul.mubr.bf16.gmra.mrb[0].mxu0 %v1135
        %v1265 = vpop.f32.mrb[0].mxu0
        %v1266 = vadd.f32 %v1097, %v1265
        %v1267 = vpop.f32.mrb[0].mxu0
        %v1268 = vpop.f32.mrb[0].mxu0
        %v1269 = vadd.f32 %v1097, %v1268
        %v1270 = vpop.f32.mrb[0].mxu0
        %1271 = vmatprep.mubr.bf16.mxu0 0
        %1272 = vmatmul.mubr.bf16.gmra.mrb[0].mxu0 %v1137
        %v1273 = vpop.f32.mrb[0].mxu0
        %v1274 = vadd.f32 %v1097, %v1273
        %v1275 = vpop.f32.mrb[0].mxu0
        %v1276 = vpop.f32.mrb[0].mxu0
        %v1277 = vadd.f32 %v1097, %v1276
        %v1278 = vpop.f32.mrb[0].mxu0
        %1279 = vmatprep.mubr.bf16.mxu0 0
        %1280 = vmatmul.mubr.bf16.gmra.mrb[0].mxu0 %v1139
        %v1281 = vpop.f32.mrb[0].mxu0
        %v1282 = vadd.f32 %v1097, %v1281
        %v1283 = vpop.f32.mrb[0].mxu0
        %v1284 = vpop.f32.mrb[0].mxu0
        %v1285 = vadd.f32 %v1097, %v1284
        %v1286 = vpop.f32.mrb[0].mxu0
        %1287 = vmatprep.mubr.bf16.mxu0 0
        %1288 = vmatmul.mubr.bf16.gmra.mrb[0].mxu0 %v1141
        %v1289 = vpop.f32.mrb[0].mxu0
        %v1290 = vadd.f32 %v1097, %v1289
        %v1291 = vpop.f32.mrb[0].mxu0
        %v1292 = vpop.f32.mrb[0].mxu0
        %v1293 = vadd.f32 %v1097, %v1292
        %v1294 = vpop.f32.mrb[0].mxu0
        %1295 = vmatprep.mubr.bf16.mxu0 0
        %1296 = vmatmul.mubr.bf16.gmra.mrb[0].mxu0 %v1143
        %v1297 = vpop.f32.mrb[0].mxu0
        %v1298 = vadd.f32 %v1097, %v1297
        %v1299 = vpop.f32.mrb[0].mxu0
        %v1300 = vpop.f32.mrb[0].mxu0
        %v1301 = vadd.f32 %v1097, %v1300
        %v1302 = vpop.f32.mrb[0].mxu0
        %1303 = vmatprep.mubr.bf16.mxu0 0
        %1304 = vmatmul.mubr.bf16.gmra.mrb[0].mxu0 %v1145
        %v1305 = vpop.f32.mrb[0].mxu0
        %v1306 = vadd.f32 %v1097, %v1305
        %v1307 = vpop.f32.mrb[0].mxu0
        %v1308 = vpop.f32.mrb[0].mxu0
        %v1309 = vadd.f32 %v1097, %v1308
        %v1310 = vpop.f32.mrb[0].mxu0
        %1311 = vdwg.mxu0
        %v1312 = vmax.f32 %v1186, 0.0
        %v1313 = vmax.f32 %v1189, 0.0
        %v1314 = vmax.f32 %v1194, 0.0
        %v1315 = vmax.f32 %v1197, 0.0
        %v1316 = vmax.f32 %v1202, 0.0
        %v1317 = vmax.f32 %v1205, 0.0
        %v1318 = vmax.f32 %v1210, 0.0
        %v1319 = vmax.f32 %v1213, 0.0
        %v1320 = vmax.f32 %v1218, 0.0
        %v1321 = vmax.f32 %v1221, 0.0
        %v1322 = vmax.f32 %v1226, 0.0
        %v1323 = vmax.f32 %v1229, 0.0
        %v1324 = vmax.f32 %v1234, 0.0
        %v1325 = vmax.f32 %v1237, 0.0
        %v1326 = vmax.f32 %v1242, 0.0
        %v1327 = vmax.f32 %v1245, 0.0
        %v1328 = vmax.f32 %v1250, 0.0
        %v1329 = vmax.f32 %v1253, 0.0
        %v1330 = vmax.f32 %v1258, 0.0
        %v1331 = vmax.f32 %v1261, 0.0
        %v1332 = vmax.f32 %v1266, 0.0
        %v1333 = vmax.f32 %v1269, 0.0
        %v1334 = vmax.f32 %v1274, 0.0
        %v1335 = vmax.f32 %v1277, 0.0
        %v1336 = vmax.f32 %v1282, 0.0
        %v1337 = vmax.f32 %v1285, 0.0
        %v1338 = vmax.f32 %v1290, 0.0
        %v1339 = vmax.f32 %v1293, 0.0
        %v1340 = vmax.f32 %v1298, 0.0
        %v1341 = vmax.f32 %v1301, 0.0
        %v1342 = vmax.f32 %v1306, 0.0
        %v1343 = vmax.f32 %v1309, 0.0
        %v1344 = vpack.c.bf16 %v1313, %v1312
        %v1345 = vpack.c.bf16 %v1315, %v1314
        %v1346 = vpack.c.bf16 %v1317, %v1316
        %v1347 = vpack.c.bf16 %v1319, %v1318
        %v1348 = vpack.c.bf16 %v1321, %v1320
        %v1349 = vpack.c.bf16 %v1323, %v1322
        %v1350 = vpack.c.bf16 %v1325, %v1324
        %v1351 = vpack.c.bf16 %v1327, %v1326
        %v1352 = vpack.c.bf16 %v1329, %v1328
        %v1353 = vpack.c.bf16 %v1331, %v1330
        %v1354 = vpack.c.bf16 %v1333, %v1332
        %v1355 = vpack.c.bf16 %v1335, %v1334
        %v1356 = vpack.c.bf16 %v1337, %v1336
        %v1357 = vpack.c.bf16 %v1339, %v1338
        %v1358 = vpack.c.bf16 %v1341, %v1340
        %v1359 = vpack.c.bf16 %v1343, %v1342
        %v1376 = vunpack.c.l.b16 %v1344
        %v1377 = vunpack.c.h.b16 %v1344
        %v1378 = vunpack.c.l.b16 %v1345
        %v1379 = vunpack.c.h.b16 %v1345
        %v1380 = vunpack.c.l.b16 %v1346
        %v1381 = vunpack.c.h.b16 %v1346
        %v1382 = vunpack.c.l.b16 %v1347
        %v1383 = vunpack.c.h.b16 %v1347
        %v1384 = vunpack.c.l.b16 %v1348
        %v1385 = vunpack.c.h.b16 %v1348
        %v1386 = vunpack.c.l.b16 %v1349
        %v1387 = vunpack.c.h.b16 %v1349
        %v1388 = vunpack.c.l.b16 %v1350
        %v1389 = vunpack.c.h.b16 %v1350
        %v1390 = vunpack.c.l.b16 %v1351
        %v1391 = vunpack.c.h.b16 %v1351
        %v1392 = vunpack.c.l.b16 %v1352
        %v1393 = vunpack.c.h.b16 %v1352
        %v1394 = vunpack.c.l.b16 %v1353
        %v1395 = vunpack.c.h.b16 %v1353
        %v1396 = vunpack.c.l.b16 %v1354
        %v1397 = vunpack.c.h.b16 %v1354
        %v1398 = vunpack.c.l.b16 %v1355
        %v1399 = vunpack.c.h.b16 %v1355
        %v1400 = vunpack.c.l.b16 %v1356
        %v1401 = vunpack.c.h.b16 %v1356
        %v1402 = vunpack.c.l.b16 %v1357
        %v1403 = vunpack.c.h.b16 %v1357
        %v1404 = vunpack.c.l.b16 %v1358
        %v1405 = vunpack.c.h.b16 %v1358
        %v1406 = vunpack.c.l.b16 %v1359
        %v1407 = vunpack.c.h.b16 %v1359
        %v1408 = vpack.c.b16 %v1376, %v1376
        %v1409 = vpack.c.b16 %v1377, %v1377
        %v1410 = vpack.c.b16 %v1378, %v1378
        %v1411 = vpack.c.b16 %v1379, %v1379
        %v1412 = vpack.c.b16 %v1380, %v1380
        %v1413 = vpack.c.b16 %v1381, %v1381
        %v1414 = vpack.c.b16 %v1382, %v1382
        %v1415 = vpack.c.b16 %v1383, %v1383
        %v1416 = vpack.c.b16 %v1384, %v1384
        %v1417 = vpack.c.b16 %v1385, %v1385
        %v1418 = vpack.c.b16 %v1386, %v1386
        %v1419 = vpack.c.b16 %v1387, %v1387
        %v1420 = vpack.c.b16 %v1388, %v1388
        %v1421 = vpack.c.b16 %v1389, %v1389
        %v1422 = vpack.c.b16 %v1390, %v1390
        %v1423 = vpack.c.b16 %v1391, %v1391
        %v1424 = vpack.c.b16 %v1392, %v1392
        %v1425 = vpack.c.b16 %v1393, %v1393
        %v1426 = vpack.c.b16 %v1394, %v1394
        %v1427 = vpack.c.b16 %v1395, %v1395
        %v1428 = vpack.c.b16 %v1396, %v1396
        %v1429 = vpack.c.b16 %v1397, %v1397
        %v1430 = vpack.c.b16 %v1398, %v1398
        %v1431 = vpack.c.b16 %v1399, %v1399
        %v1432 = vpack.c.b16 %v1400, %v1400
        %v1433 = vpack.c.b16 %v1401, %v1401
        %v1434 = vpack.c.b16 %v1402, %v1402
        %v1435 = vpack.c.b16 %v1403, %v1403
        %v1436 = vpack.c.b16 %v1404, %v1404
        %v1437 = vpack.c.b16 %v1405, %v1405
        %v1438 = vpack.c.b16 %v1406, %v1406
        %v1439 = vpack.c.b16 %v1407, %v1407
        %1472 = vst [vmem:[%s288] sm:$0xf] %v1408
        %1473 = vst [vmem:[%s288 + $0x4] sm:$0xf] %v1409
        %1474 = vst [vmem:[%s288 + $0x8] sm:$0xf] %v1410
        %1475 = vst [vmem:[%s288 + $0xc] sm:$0xf] %v1411
        %1476 = vst [vmem:[%s288 + $0x10] sm:$0xf] %v1412
        %1477 = vst [vmem:[%s288 + $0x14] sm:$0xf] %v1413
        %1478 = vst [vmem:[%s288 + $0x18] sm:$0xf] %v1414
        %1479 = vst [vmem:[%s288 + $0x1c] sm:$0xf] %v1415
        %1480 = vst [vmem:[%s288 + $0x20] sm:$0xf] %v1416
        %1481 = vst [vmem:[%s288 + $0x24] sm:$0xf] %v1417
        %1482 = vst [vmem:[%s288 + $0x28] sm:$0xf] %v1418
        %1483 = vst [vmem:[%s288 + $0x2c] sm:$0xf] %v1419
        %1484 = vst [vmem:[%s288 + $0x30] sm:$0xf] %v1420
        %1485 = vst [vmem:[%s288 + $0x34] sm:$0xf] %v1421
        %1486 = vst [vmem:[%s288 + $0x38] sm:$0xf] %v1422
        %1487 = vst [vmem:[%s288 + $0x3c] sm:$0xf] %v1423
        %1488 = vst [vmem:[%s288 + $0x40] sm:$0xf] %v1424
        %1489 = vst [vmem:[%s288 + $0x44] sm:$0xf] %v1425
        %1490 = vst [vmem:[%s288 + $0x48] sm:$0xf] %v1426
        %1491 = vst [vmem:[%s288 + $0x4c] sm:$0xf] %v1427
        %1492 = vst [vmem:[%s288 + $0x50] sm:$0xf] %v1428
        %1493 = vst [vmem:[%s288 + $0x54] sm:$0xf] %v1429
        %1494 = vst [vmem:[%s288 + $0x58] sm:$0xf] %v1430
        %1495 = vst [vmem:[%s288 + $0x5c] sm:$0xf] %v1431
        %1496 = vst [vmem:[%s288 + $0x60] sm:$0xf] %v1432
        %1497 = vst [vmem:[%s288 + $0x64] sm:$0xf] %v1433
        %1498 = vst [vmem:[%s288 + $0x68] sm:$0xf] %v1434
        %1499 = vst [vmem:[%s288 + $0x6c] sm:$0xf] %v1435
        %1500 = vst [vmem:[%s288 + $0x70] sm:$0xf] %v1436
        %1501 = vst [vmem:[%s288 + $0x74] sm:$0xf] %v1437
        %1502 = vst [vmem:[%s288 + $0x78] sm:$0xf] %v1438
        %1503 = vst [vmem:[%s288 + $0x7c] sm:$0xf] %v1439
        %s1504 = sand.u32 %s161, 1
        %s1505 = scalar_lea.sflag [#allocation3], %s1504
        %s1506 = sand.u32 %s161, 1
        %s1507 = smul.addr %s1506, 128
        %s1508 = scalar_lea.vmem [#allocation2], %s1507
        // Predicated region
        $region37: #{tpu_custom_call.1} parent=35 // pred_check
          %p1509 = pneg %p171
        $region38: #{tpu_custom_call.1} parent=35 // pred_check_branch
          %1511 = sbr.rel (%p1509) target = $region40
        $region39: #{tpu_custom_call.1} parent=35 // pred_region
          %s1512 = smul.u32 16, %s25
          %s1514 = ssub.s32 2048, 2048
          %1515 = vsyncadd %s1505, %s1514
          %s1516 = smul.addr %s1512, 2
          %s1517 = sadd.s32 %s24, %s1516
          %s1518 = smul.addr %s23, 32
          %s1519 = sadd.s32 %s1517, %s1518
          %s1520 = smul.addr %s1519, 64
          %s1521 = scalar_lea.hbm %s4, %s1520
          %s1522 = sshll.u32 %s1508, 4
          %s1523 = int_to_ptr.vmem [resolvable:$true] %s1522
          %1528 = dma.vmem_to_hbm [thread:$0]  %s1523, 2048, %s1521, %s1505, 64, 64, 4
        $region40: #{tpu_custom_call.1} parent=35 // pred_fallthru
          _
      $region36: #{tpu_custom_call.1} parent=5 // pred_fallthru
        _
      %p1529 = scmp.le.s32.totalorder 2, %s13
      // Predicated region
      $region41: #{tpu_custom_call.1} parent=5 // pred_check
        %p1530 = pneg %p1529
      $region42: #{tpu_custom_call.1} parent=5 // pred_check_branch
        %1532 = sbr.rel (%p1530) target = $region44
      $region43: #{tpu_custom_call.1} parent=5 // pred_region
        %s1533 = ssub.s32 %s13, 2
        // Predicated region
        $region45: #{tpu_custom_call.1} parent=43 // pred_check
          %p1534 = pneg %p177
        $region46: #{tpu_custom_call.1} parent=43 // pred_check_branch
          %1536 = sbr.rel (%p1534) target = $region48
        $region47: #{tpu_custom_call.1} parent=43 // pred_region
          %s1537 = sand.u32 %s162, 1
          %s1538 = scalar_lea.sflag [#allocation3], %s1537
          %s1539 = sand.u32 %s162, 1
          %s1540 = smul.addr %s1539, 128
          %s1541 = scalar_lea.vmem [#allocation2], %s1540
          %1542 = dma.done %s1538, 2048
        $region48: #{tpu_custom_call.1} parent=43 // pred_fallthru
          _
      $region44: #{tpu_custom_call.1} parent=5 // pred_fallthru
        _
    $region6: #{tpu_custom_call.1} parent=1 // loop_footer
      %s17 = sadd.s32 1, %s13
    $region7: #{tpu_custom_call.1} parent=1 // loop_footer_branch
      %12 = sbr.rel target = $region3
    $region8: #{tpu_custom_call.1} parent=1 // loop_exit
      _
    %1543 = vsyncpa [#allocation3], 1
    %s1544 = scalar_lea.sflag [#allocation3], 1
    %1545 = vsyncpa %s1544, 1

</llo_original>
